<compile_context>
chip_gen: v6e
topology: v6e:2x2x1
jax: 0.10.0
libtpu: 0.0.40
codegen_flags: <defaults>
</compile_context>

<pallas_src>
import math

import jax
import jax.numpy as jnp
from jax import lax
from jax.experimental import pallas as pl
from jax.experimental.pallas import tpu as pltpu

KSIZE = 5                      # kernel_size
STRIDE = 1                     # stride
PAD = (KSIZE - STRIDE) // 2    # PyTorch padding=(kernel_size - stride)//2
EPS = 1e-5                     # nn.LayerNorm default eps
INV_SQRT2 = 0.7071067811865476
LANES = 128
# Dropout(p=0.0) is the identity (eval semantics) -> nothing to implement.


def _make_kernel(T: int, n_rows: int, gc_in: int):
    """Single-invocation kernel over the whole packed (n_rows, gc_in) tensor."""

    def kernel(x_ref, w_ref, a_ref, p_ref, o_ref):
        x = x_ref[...].astype(jnp.float32)                    # (M, G*Cin)

        # Hoisted row-position (within each packed sample) for boundary masks.
        t = lax.broadcasted_iota(jnp.int32, (n_rows, gc_in), 0) % T

        # ---- Conv1d via im2col: K sublane rotates (XLU) + boundary masks ----
        # window_k[r] = x[r + k - PAD] if the source row lies inside the same
        # packed sample's [0, T) range, else 0 (== Conv1d zero padding).
        wins = []
        for k in range(KSIZE):
            off = k - PAD
            if off == 0:
                wins.append(x)
                continue
            w_k = pltpu.roll(x, (-off) % n_rows, 0)            # out[r] = x[r+off]
            src = t + off
            mask = jnp.logical_and(src >= 0, src < T)
            wins.append(jnp.where(mask, w_k, 0.0))
        cols = jnp.concatenate(wins, axis=1)                   # (M, K*G*Cin)

        bias = p_ref[0:1, :]
        gamma = p_ref[1:2, :]
        beta = p_ref[2:3, :]

        # One deep-contraction MXU matmul (block-diagonal conv weight) + bias.
        y = jnp.dot(cols, w_ref[...], preferred_element_type=jnp.float32) + bias

        # ---- Dropout(p=0) == identity ----

        # ---- LayerNorm over each sample's Cout channels (lane-dense) ----
        # Fused reduction: one MXU call on [y; y*y] gives E[y] and E[y^2].
        stats = jnp.dot(jnp.concatenate([y, y * y], axis=0), a_ref[...],
                        preferred_element_type=jnp.float32)    # (2M, G*Cout)
        mu = stats[:n_rows, :]
        var = stats[n_rows:, :] - mu * mu
        nrm = (y - mu) * lax.rsqrt(var + EPS) * gamma + beta

        # ---- GELU (exact, erf-based; nn.GELU default) ----
        o_ref[...] = (0.5 * nrm * (1.0 + lax.erf(nrm * INV_SQRT2))).astype(
            o_ref.dtype)

    return kernel


@jax.jit
def conv_layer(x, w, b, gamma, beta):
    """ConvLayer forward.

    x     : (B, T, C_in)  float32
    w     : (C_out, C_in, K)  torch Conv1d weight layout
    b     : (C_out,)          conv bias
    gamma : (C_out,)          LayerNorm weight
    beta  : (C_out,)          LayerNorm bias
    returns (B, T, C_out) float32
    """
    B, T, C = x.shape
    Cout = w.shape[0]
    assert w.shape == (Cout, C, KSIZE)

    # Lane-packing factor: channels of G samples side by side on the 128 lanes.
    if C <= LANES and Cout <= LANES and LANES % C == 0 and LANES % Cout == 0:
        G = math.gcd(B, min(LANES // C, LANES // Cout))
    else:
        G = 1  # perf cliff (masked stores), still correct
    G = max(G, 1)
    PB = B // G                         # packed batch, folded onto sublanes
    M = PB * T                          # total rows in the single kernel call
    Mpad = ((M + 7) // 8) * 8           # keep sublane count a multiple of 8

    # (B, T, C) -> (PB*T, G*C): layout plumbing done once in XLA.
    xp = x.reshape(PB, G, T, C).transpose(0, 2, 1, 3).reshape(M, G * C)
    if Mpad != M:
        xp = jnp.concatenate(
            [xp, jnp.zeros((Mpad - M, G * C), xp.dtype)], axis=0)

    # Per-tap weights (K, Cin, Cout), block-diagonal over the G lane groups and
    # stacked along the im2col contraction axis -> (K*G*Cin, G*Cout).
    w_taps = jnp.transpose(w, (2, 1, 0)).astype(jnp.float32)      # (K, Cin, Cout)
    eye_g = jnp.eye(G, dtype=jnp.float32)
    w_big = jnp.einsum('gh,kio->kgiho', eye_g, w_taps).reshape(
        KSIZE * G * C, G * Cout)

    # Block-diagonal group-mean matrix (each lane gets its own sample's mean).
    a_mat = jnp.einsum('gh,ij->gihj', eye_g,
                       jnp.full((Cout, Cout), 1.0 / Cout, jnp.float32)
                       ).reshape(G * Cout, G * Cout)

    # Conv bias / LN gamma / LN beta merged into one (8, G*Cout) tile.
    params = jnp.zeros((8, G * Cout), jnp.float32)
    params = params.at[0].set(jnp.tile(b.astype(jnp.float32), G))
    params = params.at[1].set(jnp.tile(gamma.astype(jnp.float32), G))
    params = params.at[2].set(jnp.tile(beta.astype(jnp.float32), G))

    kernel = _make_kernel(T, Mpad, G * C)
    # Single invocation, whole arrays resident in VMEM (tiny at these sizes).
    out_p = pl.pallas_call(
        kernel,
        out_shape=jax.ShapeDtypeStruct((Mpad, G * Cout), x.dtype),
    )(xp, w_big, a_mat, params)

    # Unpack (PB*T, G*Cout) -> (B, T, Cout).
    return out_p[:M].reshape(PB, T, G, Cout).transpose(0, 2, 1, 3).reshape(
        B, T, Cout)


def reference(x, w, b, gamma, beta):
    """Pure-JAX replica of the PyTorch ConvLayer forward (for validation)."""
    y = lax.conv_general_dilated(
        jnp.transpose(x, (0, 2, 1)),        # (B, C, T)
        w,                                  # (O, I, K)
        window_strides=(STRIDE,),
        padding=[(PAD, PAD)],
        dimension_numbers=("NCH", "OIH", "NCH"),
    )
    y = jnp.transpose(y, (0, 2, 1)) + b[None, None, :]
    mu = y.mean(-1, keepdims=True)
    var = ((y - mu) ** 2).mean(-1, keepdims=True)
    y = (y - mu) / jnp.sqrt(var + EPS) * gamma[None, None, :] + beta[None, None, :]
    return jax.nn.gelu(y, approximate=False)


if __name__ == "__main__":
    # Small synthetic shapes: hidden=32 channels, 16 frames; batch 8 packs
    # 4 samples' channels onto the 128 lanes, 2 packed rows fold onto sublanes
    # -> one lane-dense kernel invocation with M=32 rows.
    B, T, C = 8, 16, 32

    key = jax.random.PRNGKey(0)
    kx, kw, kb, kg, kbe = jax.random.split(key, 5)
    x = jax.random.normal(kx, (B, T, C), jnp.float32)
    fan_in = C * KSIZE
    w = jax.random.normal(kw, (C, C, KSIZE), jnp.float32) / jnp.sqrt(fan_in)
    b = 0.1 * jax.random.normal(kb, (C,), jnp.float32)
    gamma = 1.0 + 0.1 * jax.random.normal(kg, (C,), jnp.float32)
    beta = 0.1 * jax.random.normal(kbe, (C,), jnp.float32)

    out = jax.block_until_ready(conv_layer(x, w, b, gamma, beta))
    ref = jax.block_until_ready(reference(x, w, b, gamma, beta))

    assert out.shape == (B, T, C) and out.dtype == jnp.float32
    max_err = float(jnp.max(jnp.abs(out - ref)))
    assert jnp.allclose(out, ref, atol=2e-4, rtol=2e-4), max_err

    print("KERNEL_OK")
</pallas_src>

<mosaic_0001>
module attributes {stable_mosaic.version = 11 : i64} {
  func.func @kernel(%arg0: memref<32x128xf32, #tpu.memory_space<vmem>>, %arg1: memref<640x128xf32, #tpu.memory_space<vmem>>, %arg2: memref<128x128xf32, #tpu.memory_space<vmem>>, %arg3: memref<8x128xf32, #tpu.memory_space<vmem>>, %arg4: memref<32x128xf32, #tpu.memory_space<vmem>>) attributes {dimension_semantics = [], scalar_prefetch = 0 : i64, scratch_operands = 0 : i64, tpu.core_type = #tpu.core_type<tc>} {
    %c0 = arith.constant 0 : index
    %c0_0 = arith.constant 0 : index
    %0 = vector.load %arg0[%c0, %c0_0] : memref<32x128xf32, #tpu.memory_space<vmem>>, vector<32x128xf32>
    %1 = tpu.iota {dimensions = array<i32: 0>} : vector<32x128xi32>
    %c16_i32 = arith.constant 16 : i32
    %c0_i32 = arith.constant 0 : i32
    %2 = arith.cmpi eq, %c16_i32, %c0_i32 : i32
    %c1_i32 = arith.constant 1 : i32
    %3 = arith.select %2, %c1_i32, %c16_i32 : i32
    %4 = vector.broadcast %3 : i32 to vector<32x128xi32>
    %5 = arith.remsi %1, %4 : vector<32x128xi32>
    %c0_i32_1 = arith.constant 0 : i32
    %6 = vector.broadcast %c0_i32_1 : i32 to vector<32x128xi32>
    %7 = arith.cmpi ne, %5, %6 : vector<32x128xi32>
    %c0_i32_2 = arith.constant 0 : i32
    %8 = vector.broadcast %c0_i32_2 : i32 to vector<32x128xi32>
    %9 = arith.cmpi slt, %5, %8 : vector<32x128xi32>
    %c0_i32_3 = arith.constant 0 : i32
    %10 = arith.cmpi slt, %3, %c0_i32_3 : i32
    %11 = vector.broadcast %10 : i1 to vector<32x128xi1>
    %12 = vector.broadcast %11 : vector<32x128xi1> to vector<32x128xi1>
    %13 = arith.xori %9, %12 : vector<32x128xi1>
    %14 = arith.andi %13, %7 : vector<32x128xi1>
    %15 = vector.broadcast %3 : i32 to vector<32x128xi32>
    %16 = arith.addi %5, %15 : vector<32x128xi32>
    %17 = arith.select %14, %16, %5 : vector<32x128xi1>, vector<32x128xi32>
    %c2_i32 = arith.constant 2 : i32
    %18 = tpu.dynamic_rotate %0 by %c2_i32 dim 0 : vector<32x128xf32>, i32 -> vector<32x128xf32>
    %c-2_i32 = arith.constant -2 : i32
    %19 = vector.broadcast %c-2_i32 : i32 to vector<32x128xi32>
    %20 = arith.addi %17, %19 : vector<32x128xi32>
    %c0_i32_4 = arith.constant 0 : i32
    %21 = vector.broadcast %c0_i32_4 : i32 to vector<32x128xi32>
    %22 = arith.cmpi sge, %20, %21 : vector<32x128xi32>
    %c16_i32_5 = arith.constant 16 : i32
    %23 = vector.broadcast %c16_i32_5 : i32 to vector<32x128xi32>
    %24 = arith.cmpi slt, %20, %23 : vector<32x128xi32>
    %25 = arith.andi %22, %24 : vector<32x128xi1>
    %cst = arith.constant 0.000000e+00 : f32
    %26 = vector.broadcast %cst : f32 to vector<32x128xf32>
    %27 = arith.select %25, %18, %26 : vector<32x128xi1>, vector<32x128xf32>
    %c1_i32_6 = arith.constant 1 : i32
    %28 = tpu.dynamic_rotate %0 by %c1_i32_6 dim 0 : vector<32x128xf32>, i32 -> vector<32x128xf32>
    %c-1_i32 = arith.constant -1 : i32
    %29 = vector.broadcast %c-1_i32 : i32 to vector<32x128xi32>
    %30 = arith.addi %17, %29 : vector<32x128xi32>
    %c0_i32_7 = arith.constant 0 : i32
    %31 = vector.broadcast %c0_i32_7 : i32 to vector<32x128xi32>
    %32 = arith.cmpi sge, %30, %31 : vector<32x128xi32>
    %c16_i32_8 = arith.constant 16 : i32
    %33 = vector.broadcast %c16_i32_8 : i32 to vector<32x128xi32>
    %34 = arith.cmpi slt, %30, %33 : vector<32x128xi32>
    %35 = arith.andi %32, %34 : vector<32x128xi1>
    %cst_9 = arith.constant 0.000000e+00 : f32
    %36 = vector.broadcast %cst_9 : f32 to vector<32x128xf32>
    %37 = arith.select %35, %28, %36 : vector<32x128xi1>, vector<32x128xf32>
    %c31_i32 = arith.constant 31 : i32
    %38 = tpu.dynamic_rotate %0 by %c31_i32 dim 0 : vector<32x128xf32>, i32 -> vector<32x128xf32>
    %c1_i32_10 = arith.constant 1 : i32
    %39 = vector.broadcast %c1_i32_10 : i32 to vector<32x128xi32>
    %40 = arith.addi %17, %39 : vector<32x128xi32>
    %c0_i32_11 = arith.constant 0 : i32
    %41 = vector.broadcast %c0_i32_11 : i32 to vector<32x128xi32>
    %42 = arith.cmpi sge, %40, %41 : vector<32x128xi32>
    %c16_i32_12 = arith.constant 16 : i32
    %43 = vector.broadcast %c16_i32_12 : i32 to vector<32x128xi32>
    %44 = arith.cmpi slt, %40, %43 : vector<32x128xi32>
    %45 = arith.andi %42, %44 : vector<32x128xi1>
    %cst_13 = arith.constant 0.000000e+00 : f32
    %46 = vector.broadcast %cst_13 : f32 to vector<32x128xf32>
    %47 = arith.select %45, %38, %46 : vector<32x128xi1>, vector<32x128xf32>
    %c30_i32 = arith.constant 30 : i32
    %48 = tpu.dynamic_rotate %0 by %c30_i32 dim 0 : vector<32x128xf32>, i32 -> vector<32x128xf32>
    %c2_i32_14 = arith.constant 2 : i32
    %49 = vector.broadcast %c2_i32_14 : i32 to vector<32x128xi32>
    %50 = arith.addi %17, %49 : vector<32x128xi32>
    %c0_i32_15 = arith.constant 0 : i32
    %51 = vector.broadcast %c0_i32_15 : i32 to vector<32x128xi32>
    %52 = arith.cmpi sge, %50, %51 : vector<32x128xi32>
    %c16_i32_16 = arith.constant 16 : i32
    %53 = vector.broadcast %c16_i32_16 : i32 to vector<32x128xi32>
    %54 = arith.cmpi slt, %50, %53 : vector<32x128xi32>
    %55 = arith.andi %52, %54 : vector<32x128xi1>
    %cst_17 = arith.constant 0.000000e+00 : f32
    %56 = vector.broadcast %cst_17 : f32 to vector<32x128xf32>
    %57 = arith.select %55, %48, %56 : vector<32x128xi1>, vector<32x128xf32>
    %58 = tpu.concatenate %27, %37, %0, %47, %57 in 1 : vector<32x128xf32>, vector<32x128xf32>, vector<32x128xf32>, vector<32x128xf32>, vector<32x128xf32> -> vector<32x640xf32>
    %c0_18 = arith.constant 0 : index
    %c0_19 = arith.constant 0 : index
    %59 = vector.load %arg3[%c0_18, %c0_19] : memref<8x128xf32, #tpu.memory_space<vmem>>, vector<1x128xf32>
    %c1 = arith.constant 1 : index
    %c0_20 = arith.constant 0 : index
    %60 = vector.load %arg3[%c1, %c0_20] : memref<8x128xf32, #tpu.memory_space<vmem>>, vector<1x128xf32>
    %c2 = arith.constant 2 : index
    %c0_21 = arith.constant 0 : index
    %61 = vector.load %arg3[%c2, %c0_21] : memref<8x128xf32, #tpu.memory_space<vmem>>, vector<1x128xf32>
    %c0_22 = arith.constant 0 : index
    %c0_23 = arith.constant 0 : index
    %62 = vector.load %arg1[%c0_22, %c0_23] : memref<640x128xf32, #tpu.memory_space<vmem>>, vector<640x128xf32>
    %cst_24 = arith.constant dense<0.000000e+00> : vector<32x128xf32>
    %63 = tpu.matmul %58, %62, %cst_24 {dimension_numbers = #tpu.dot_dimension_numbers<[1], [0], [0], [1], [0, 0, 1, 1], [], []>} : vector<32x640xf32>, vector<640x128xf32>, vector<32x128xf32> -> vector<32x128xf32>
    %64 = vector.broadcast %59 : vector<1x128xf32> to vector<32x128xf32>
    %65 = arith.addf %63, %64 : vector<32x128xf32>
    %66 = arith.mulf %65, %65 : vector<32x128xf32>
    %67 = tpu.concatenate %65, %66 in 0 : vector<32x128xf32>, vector<32x128xf32> -> vector<64x128xf32>
    %c0_25 = arith.constant 0 : index
    %c0_26 = arith.constant 0 : index
    %68 = vector.load %arg2[%c0_25, %c0_26] : memref<128x128xf32, #tpu.memory_space<vmem>>, vector<128x128xf32>
    %cst_27 = arith.constant dense<0.000000e+00> : vector<64x128xf32>
    %69 = tpu.matmul %67, %68, %cst_27 {dimension_numbers = #tpu.dot_dimension_numbers<[1], [0], [0], [1], [0, 0, 1, 1], [], []>} : vector<64x128xf32>, vector<128x128xf32>, vector<64x128xf32> -> vector<64x128xf32>
    %70 = vector.extract_strided_slice %69 {offsets = [0, 0], sizes = [32, 128], strides = [1, 1]} : vector<64x128xf32> to vector<32x128xf32>
    %71 = vector.extract_strided_slice %69 {offsets = [32, 0], sizes = [32, 128], strides = [1, 1]} : vector<64x128xf32> to vector<32x128xf32>
    %72 = arith.mulf %70, %70 : vector<32x128xf32>
    %73 = arith.subf %71, %72 : vector<32x128xf32>
    %74 = arith.subf %65, %70 : vector<32x128xf32>
    %cst_28 = arith.constant 9.99999974E-6 : f32
    %75 = vector.broadcast %cst_28 : f32 to vector<32x128xf32>
    %76 = arith.addf %73, %75 : vector<32x128xf32>
    %77 = math.rsqrt %76 : vector<32x128xf32>
    %78 = arith.mulf %74, %77 : vector<32x128xf32>
    %79 = vector.broadcast %60 : vector<1x128xf32> to vector<32x128xf32>
    %80 = arith.mulf %78, %79 : vector<32x128xf32>
    %81 = vector.broadcast %61 : vector<1x128xf32> to vector<32x128xf32>
    %82 = arith.addf %80, %81 : vector<32x128xf32>
    %cst_29 = arith.constant 5.000000e-01 : f32
    %83 = vector.broadcast %cst_29 : f32 to vector<32x128xf32>
    %84 = arith.mulf %83, %82 : vector<32x128xf32>
    %cst_30 = arith.constant 0.707106769 : f32
    %85 = vector.broadcast %cst_30 : f32 to vector<32x128xf32>
    %86 = arith.mulf %82, %85 : vector<32x128xf32>
    %87 = math.erf %86 : vector<32x128xf32>
    %cst_31 = arith.constant 1.000000e+00 : f32
    %88 = vector.broadcast %cst_31 : f32 to vector<32x128xf32>
    %89 = arith.addf %88, %87 : vector<32x128xf32>
    %90 = arith.mulf %84, %89 : vector<32x128xf32>
    %c0_32 = arith.constant 0 : index
    %c0_33 = arith.constant 0 : index
    %91 = vector.load %arg4[%c0_32, %c0_33] : memref<32x128xf32, #tpu.memory_space<vmem>>, vector<32x128xf32>
    tpu.vector_store %arg4[%c0_32, %c0_33], %90 {strides = array<i32>} : memref<32x128xf32, #tpu.memory_space<vmem>>, vector<32x128xf32>,
    return
  }
}

</mosaic_0001>

<llo_original>
// kernel: tile.18
$region0: #{tile.18}
  #allocation0 [shape = 's32[1]{0}', space=sflag, size = 0x4, scoped, tag = 'scoped memory for tile.18']
  %s0 = inlined_call_operand.vmem [shape: f32[32], index: 0, kind: input, shape index: {}]
  %s1 = inlined_call_operand.vmem [shape: f32[4,32], index: 1, kind: output, shape index: {}]
  // Predicated region
  $region2: #{tile.18} parent=0 // pred_check
    _
  $region3: #{tile.18} parent=0 // pred_check_branch
    %3 = sbr.rel (0) target = $region5
  $region4: #{tile.18} parent=0 // pred_region
    _
  $region5: #{tile.18} parent=0 // pred_fallthru
    _
  %v4 = vld [vmem:[%s0] ss:$0 sm:$0xff]
  %5 = vst [vmem:[%s1] sm:$0xf] %v4

// kernel: conv_layer.1
$region0: #{conv_layer.1}
  #allocation0 [shape = 'u32[]', space=smem, size = 0x4, offset = 0x4, fixed_abs, tag = 'smem constant byte address 0x4 - core index']
  #allocation1 [shape = 'u32[144,128]{1,0:T(1,128)}', space=vmem, size = 0x12000, scoped, tag = 'internal scratch']
  %s0 = inlined_call_operand.vmem [shape: f32[32,128], index: 0, kind: input, shape index: {}]
  %s1 = inlined_call_operand.vmem [shape: f32[640,128], index: 1, kind: input, shape index: {}]
  %s2 = inlined_call_operand.vmem [shape: f32[128,128], index: 2, kind: input, shape index: {}]
  %s3 = inlined_call_operand.vmem [shape: f32[8,128], index: 3, kind: input, shape index: {}]
  %s4 = inlined_call_operand.vmem [shape: f32[32,128], index: 4, kind: output, shape index: {}]
  %s5 = sld [smem:[#allocation0]]
  $region26: #{conv_layer.1} parent=0
    _
  %s7 = ssub.s32 1, %s5
  %s8 = scalar_select 0, %s7, %s5
  // Predicated region
  $region2: #{conv_layer.1} parent=0 // pred_check
    _
  $region3: #{conv_layer.1} parent=0 // pred_check_branch
    %10 = sbr.rel (0) target = $region5
  $region4: #{conv_layer.1} parent=0 // pred_region
    _
  $region5: #{conv_layer.1} parent=0 // pred_fallthru
    _
  // Predicated region
  $region6: #{conv_layer.1} parent=0 // pred_check
    _
  $region7: #{conv_layer.1} parent=0 // pred_check_branch
    %12 = sbr.rel (0) target = $region9
  $region8: #{conv_layer.1} parent=0 // pred_region
    _
  $region9: #{conv_layer.1} parent=0 // pred_fallthru
    _
  // Predicated region
  $region10: #{conv_layer.1} parent=0 // pred_check
    _
  $region11: #{conv_layer.1} parent=0 // pred_check_branch
    %14 = sbr.rel (0) target = $region13
  $region12: #{conv_layer.1} parent=0 // pred_region
    _
  $region13: #{conv_layer.1} parent=0 // pred_fallthru
    _
  // Predicated region
  $region14: #{conv_layer.1} parent=0 // pred_check
    _
  $region15: #{conv_layer.1} parent=0 // pred_check_branch
    %16 = sbr.rel (0) target = $region17
  $region16: #{conv_layer.1} parent=0 // pred_region
    _
  $region17: #{conv_layer.1} parent=0 // pred_fallthru
    _
  %v17 = vld [vmem:[%s0] sm:$0xff]
  %v18 = vld [vmem:[%s0 + $0x8] sm:$0xff]
  %v19 = vld [vmem:[%s0 + $0x10] sm:$0xff]
  %v20 = vld [vmem:[%s0 + $0x18] sm:$0xff]
  %v21 = vlaneseq
  %v22 = vshrl.u32 %v21, 7
  %v23 = vadd.s32 %v22, 8
  %v24 = vadd.s32 %v22, 16
  %v25 = vadd.s32 %v22, 24
  %vm26 = vcmp.lt.s32.totalorder %v22, 0
  %v27 = vsub.s32 0, %v22
  %v28 = vsel %vm26, %v27, %v22
  %v29 = vshrl.u32 %v28, 4
  %v30 = vand.u32 %v28, 15
  %v31 = vsub.s32 0, %v30
  %v32 = vsel %vm26, %v31, %v30
  %vm33 = vcmp.lt.s32.totalorder %v23, 0
  %v34 = vsub.s32 0, %v23
  %v35 = vsel %vm33, %v34, %v23
  %v36 = vshrl.u32 %v35, 4
  %v37 = vand.u32 %v35, 15
  %v38 = vsub.s32 0, %v37
  %v39 = vsel %vm33, %v38, %v37
  %vm40 = vcmp.lt.s32.totalorder %v24, 0
  %v41 = vsub.s32 0, %v24
  %v42 = vsel %vm40, %v41, %v24
  %v43 = vshrl.u32 %v42, 4
  %v44 = vand.u32 %v42, 15
  %v45 = vsub.s32 0, %v44
  %v46 = vsel %vm40, %v45, %v44
  %vm47 = vcmp.lt.s32.totalorder %v25, 0
  %v48 = vsub.s32 0, %v25
  %v49 = vsel %vm47, %v48, %v25
  %v50 = vshrl.u32 %v49, 4
  %v51 = vand.u32 %v49, 15
  %v52 = vsub.s32 0, %v51
  %v53 = vsel %vm47, %v52, %v51
  %vm54 = vcmp.ne.s32.totalorder %v32, 0
  %vm55 = vcmp.ne.s32.totalorder %v39, 0
  %vm56 = vcmp.ne.s32.totalorder %v46, 0
  %vm57 = vcmp.ne.s32.totalorder %v53, 0
  %vm58 = vcmp.lt.s32.totalorder %v32, 0
  %vm59 = vcmp.lt.s32.totalorder %v39, 0
  %vm60 = vcmp.lt.s32.totalorder %v46, 0
  %vm61 = vcmp.lt.s32.totalorder %v53, 0
  %vm62 = vmand %vm58, %vm54
  %vm63 = vmand %vm59, %vm55
  %vm64 = vmand %vm60, %vm56
  %vm65 = vmand %vm61, %vm57
  %v66 = vadd.s32 %v32, 16
  %v67 = vadd.s32 %v39, 16
  %v68 = vadd.s32 %v46, 16
  %v69 = vadd.s32 %v53, 16
  %v70 = vsel %vm62, %v66, %v32
  %v71 = vsel %vm63, %v67, %v39
  %v72 = vsel %vm64, %v68, %v46
  %v73 = vsel %vm65, %v69, %v53
  %v74 = vrot.slane %v17, 6
  %v75 = vrot.slane %v18, 6
  %v76 = vrot.slane %v19, 6
  %v77 = vrot.slane %v20, 6
  %vm78 = vcmp.lt.s32.totalorder %v22, 2
  %v79 = vsel %vm78, %v76, %v77
  %v80 = vsel %vm78, %v75, %v76
  %v81 = vsel %vm78, %v74, %v75
  %v82 = vsel %vm78, %v77, %v74
  %v83 = vadd.s32 %v70, 4294967294
  %v84 = vadd.s32 %v71, 4294967294
  %v85 = vadd.s32 %v72, 4294967294
  %v86 = vadd.s32 %v73, 4294967294
  %vm87 = vcmp.ge.s32.totalorder %v83, 0
  %vm88 = vcmp.ge.s32.totalorder %v84, 0
  %vm89 = vcmp.ge.s32.totalorder %v85, 0
  %vm90 = vcmp.ge.s32.totalorder %v86, 0
  %vm91 = vcmp.lt.s32.totalorder %v83, 16
  %vm92 = vcmp.lt.s32.totalorder %v84, 16
  %vm93 = vcmp.lt.s32.totalorder %v85, 16
  %vm94 = vcmp.lt.s32.totalorder %v86, 16
  %vm95 = vmand %vm87, %vm91
  %vm96 = vmand %vm88, %vm92
  %vm97 = vmand %vm89, %vm93
  %vm98 = vmand %vm90, %vm94
  %v99 = vsel %vm95, %v82, 0.0
  %v100 = vsel %vm96, %v81, 0.0
  %v101 = vsel %vm97, %v80, 0.0
  %v102 = vsel %vm98, %v79, 0.0
  %v103 = vrot.slane %v17, 7
  %v104 = vrot.slane %v18, 7
  %v105 = vrot.slane %v19, 7
  %v106 = vrot.slane %v20, 7
  %vm107 = vcmp.lt.s32.totalorder %v22, 1
  %v108 = vsel %vm107, %v105, %v106
  %v109 = vsel %vm107, %v104, %v105
  %v110 = vsel %vm107, %v103, %v104
  %v111 = vsel %vm107, %v106, %v103
  %v112 = vadd.s32 %v70, 4294967295
  %v113 = vadd.s32 %v71, 4294967295
  %v114 = vadd.s32 %v72, 4294967295
  %v115 = vadd.s32 %v73, 4294967295
  %vm116 = vcmp.ge.s32.totalorder %v112, 0
  %vm117 = vcmp.ge.s32.totalorder %v113, 0
  %vm118 = vcmp.ge.s32.totalorder %v114, 0
  %vm119 = vcmp.ge.s32.totalorder %v115, 0
  %vm120 = vcmp.lt.s32.totalorder %v112, 16
  %vm121 = vcmp.lt.s32.totalorder %v113, 16
  %vm122 = vcmp.lt.s32.totalorder %v114, 16
  %vm123 = vcmp.lt.s32.totalorder %v115, 16
  %vm124 = vmand %vm116, %vm120
  %vm125 = vmand %vm117, %vm121
  %vm126 = vmand %vm118, %vm122
  %vm127 = vmand %vm119, %vm123
  %v128 = vsel %vm124, %v111, 0.0
  %v129 = vsel %vm125, %v110, 0.0
  %v130 = vsel %vm126, %v109, 0.0
  %v131 = vsel %vm127, %v108, 0.0
  %v132 = vrot.slane %v17, 1
  %v133 = vrot.slane %v18, 1
  %v134 = vrot.slane %v19, 1
  %v135 = vrot.slane %v20, 1
  %vm136 = vcmp.lt.s32.totalorder %v22, 7
  %v137 = vsel %vm136, %v134, %v135
  %v138 = vsel %vm136, %v133, %v134
  %v139 = vsel %vm136, %v132, %v133
  %v140 = vsel %vm136, %v135, %v132
  %v141 = vadd.s32 %v70, 1
  %v142 = vadd.s32 %v71, 1
  %v143 = vadd.s32 %v72, 1
  %v144 = vadd.s32 %v73, 1
  %vm145 = vcmp.ge.s32.totalorder %v141, 0
  %vm146 = vcmp.ge.s32.totalorder %v142, 0
  %vm147 = vcmp.ge.s32.totalorder %v143, 0
  %vm148 = vcmp.ge.s32.totalorder %v144, 0
  %vm149 = vcmp.lt.s32.totalorder %v141, 16
  %vm150 = vcmp.lt.s32.totalorder %v142, 16
  %vm151 = vcmp.lt.s32.totalorder %v143, 16
  %vm152 = vcmp.lt.s32.totalorder %v144, 16
  %vm153 = vmand %vm145, %vm149
  %vm154 = vmand %vm146, %vm150
  %vm155 = vmand %vm147, %vm151
  %vm156 = vmand %vm148, %vm152
  %v157 = vsel %vm153, %v139, 0.0
  %v158 = vsel %vm154, %v138, 0.0
  %v159 = vsel %vm155, %v137, 0.0
  %v160 = vsel %vm156, %v140, 0.0
  %v161 = vrot.slane %v17, 2
  %v162 = vrot.slane %v18, 2
  %v163 = vrot.slane %v19, 2
  %v164 = vrot.slane %v20, 2
  %vm165 = vcmp.lt.s32.totalorder %v22, 6
  %v166 = vsel %vm165, %v163, %v164
  %v167 = vsel %vm165, %v162, %v163
  %v168 = vsel %vm165, %v161, %v162
  %v169 = vsel %vm165, %v164, %v161
  %v170 = vadd.s32 %v70, 2
  %v171 = vadd.s32 %v71, 2
  %v172 = vadd.s32 %v72, 2
  %v173 = vadd.s32 %v73, 2
  %vm174 = vcmp.ge.s32.totalorder %v170, 0
  %vm175 = vcmp.ge.s32.totalorder %v171, 0
  %vm176 = vcmp.ge.s32.totalorder %v172, 0
  %vm177 = vcmp.ge.s32.totalorder %v173, 0
  %vm178 = vcmp.lt.s32.totalorder %v170, 16
  %vm179 = vcmp.lt.s32.totalorder %v171, 16
  %vm180 = vcmp.lt.s32.totalorder %v172, 16
  %vm181 = vcmp.lt.s32.totalorder %v173, 16
  %vm182 = vmand %vm174, %vm178
  %vm183 = vmand %vm175, %vm179
  %vm184 = vmand %vm176, %vm180
  %vm185 = vmand %vm177, %vm181
  %v186 = vsel %vm182, %v168, 0.0
  %v187 = vsel %vm183, %v167, 0.0
  %v188 = vsel %vm184, %v166, 0.0
  %v189 = vsel %vm185, %v169, 0.0
  %v190 = vld [vmem:[%s3] sm:$0x1]
  %v191 = vld [vmem:[%s3 + $0x1] sm:$0x1]
  %v192 = vld [vmem:[%s3 + $0x2] sm:$0x1]
  %v193 = vld [vmem:[%s1] sm:$0xff]
  %v194 = vld [vmem:[%s1 + $0x8] sm:$0xff]
  %v195 = vld [vmem:[%s1 + $0x10] sm:$0xff]
  %v196 = vld [vmem:[%s1 + $0x18] sm:$0xff]
  %v197 = vld [vmem:[%s1 + $0x20] sm:$0xff]
  %v198 = vld [vmem:[%s1 + $0x28] sm:$0xff]
  %v199 = vld [vmem:[%s1 + $0x30] sm:$0xff]
  %v200 = vld [vmem:[%s1 + $0x38] sm:$0xff]
  %v201 = vld [vmem:[%s1 + $0x40] sm:$0xff]
  %v202 = vld [vmem:[%s1 + $0x48] sm:$0xff]
  %v203 = vld [vmem:[%s1 + $0x50] sm:$0xff]
  %v204 = vld [vmem:[%s1 + $0x58] sm:$0xff]
  %v205 = vld [vmem:[%s1 + $0x60] sm:$0xff]
  %v206 = vld [vmem:[%s1 + $0x68] sm:$0xff]
  %v207 = vld [vmem:[%s1 + $0x70] sm:$0xff]
  %v208 = vld [vmem:[%s1 + $0x78] sm:$0xff]
  %v209 = vld [vmem:[%s1 + $0x80] sm:$0xff]
  %v210 = vld [vmem:[%s1 + $0x88] sm:$0xff]
  %v211 = vld [vmem:[%s1 + $0x90] sm:$0xff]
  %v212 = vld [vmem:[%s1 + $0x98] sm:$0xff]
  %v213 = vld [vmem:[%s1 + $0xa0] sm:$0xff]
  %v214 = vld [vmem:[%s1 + $0xa8] sm:$0xff]
  %v215 = vld [vmem:[%s1 + $0xb0] sm:$0xff]
  %v216 = vld [vmem:[%s1 + $0xb8] sm:$0xff]
  %v217 = vld [vmem:[%s1 + $0xc0] sm:$0xff]
  %v218 = vld [vmem:[%s1 + $0xc8] sm:$0xff]
  %v219 = vld [vmem:[%s1 + $0xd0] sm:$0xff]
  %v220 = vld [vmem:[%s1 + $0xd8] sm:$0xff]
  %v221 = vld [vmem:[%s1 + $0xe0] sm:$0xff]
  %v222 = vld [vmem:[%s1 + $0xe8] sm:$0xff]
  %v223 = vld [vmem:[%s1 + $0xf0] sm:$0xff]
  %v224 = vld [vmem:[%s1 + $0xf8] sm:$0xff]
  %v225 = vld [vmem:[%s1 + $0x100] sm:$0xff]
  %v226 = vld [vmem:[%s1 + $0x108] sm:$0xff]
  %v227 = vld [vmem:[%s1 + $0x110] sm:$0xff]
  %v228 = vld [vmem:[%s1 + $0x118] sm:$0xff]
  %v229 = vld [vmem:[%s1 + $0x120] sm:$0xff]
  %v230 = vld [vmem:[%s1 + $0x128] sm:$0xff]
  %v231 = vld [vmem:[%s1 + $0x130] sm:$0xff]
  %v232 = vld [vmem:[%s1 + $0x138] sm:$0xff]
  %v233 = vld [vmem:[%s1 + $0x140] sm:$0xff]
  %v234 = vld [vmem:[%s1 + $0x148] sm:$0xff]
  %v235 = vld [vmem:[%s1 + $0x150] sm:$0xff]
  %v236 = vld [vmem:[%s1 + $0x158] sm:$0xff]
  %v237 = vld [vmem:[%s1 + $0x160] sm:$0xff]
  %v238 = vld [vmem:[%s1 + $0x168] sm:$0xff]
  %v239 = vld [vmem:[%s1 + $0x170] sm:$0xff]
  %v240 = vld [vmem:[%s1 + $0x178] sm:$0xff]
  %v241 = vld [vmem:[%s1 + $0x180] sm:$0xff]
  %v242 = vld [vmem:[%s1 + $0x188] sm:$0xff]
  %v243 = vld [vmem:[%s1 + $0x190] sm:$0xff]
  %v244 = vld [vmem:[%s1 + $0x198] sm:$0xff]
  %v245 = vld [vmem:[%s1 + $0x1a0] sm:$0xff]
  %v246 = vld [vmem:[%s1 + $0x1a8] sm:$0xff]
  %v247 = vld [vmem:[%s1 + $0x1b0] sm:$0xff]
  %v248 = vld [vmem:[%s1 + $0x1b8] sm:$0xff]
  %v249 = vld [vmem:[%s1 + $0x1c0] sm:$0xff]
  %v250 = vld [vmem:[%s1 + $0x1c8] sm:$0xff]
  %v251 = vld [vmem:[%s1 + $0x1d0] sm:$0xff]
  %v252 = vld [vmem:[%s1 + $0x1d8] sm:$0xff]
  %v253 = vld [vmem:[%s1 + $0x1e0] sm:$0xff]
  %v254 = vld [vmem:[%s1 + $0x1e8] sm:$0xff]
  %v255 = vld [vmem:[%s1 + $0x1f0] sm:$0xff]
  %v256 = vld [vmem:[%s1 + $0x1f8] sm:$0xff]
  %v257 = vld [vmem:[%s1 + $0x200] sm:$0xff]
  %v258 = vld [vmem:[%s1 + $0x208] sm:$0xff]
  %v259 = vld [vmem:[%s1 + $0x210] sm:$0xff]
  %v260 = vld [vmem:[%s1 + $0x218] sm:$0xff]
  %v261 = vld [vmem:[%s1 + $0x220] sm:$0xff]
  %v262 = vld [vmem:[%s1 + $0x228] sm:$0xff]
  %v263 = vld [vmem:[%s1 + $0x230] sm:$0xff]
  %v264 = vld [vmem:[%s1 + $0x238] sm:$0xff]
  %v265 = vld [vmem:[%s1 + $0x240] sm:$0xff]
  %v266 = vld [vmem:[%s1 + $0x248] sm:$0xff]
  %v267 = vld [vmem:[%s1 + $0x250] sm:$0xff]
  %v268 = vld [vmem:[%s1 + $0x258] sm:$0xff]
  %v269 = vld [vmem:[%s1 + $0x260] sm:$0xff]
  %v270 = vld [vmem:[%s1 + $0x268] sm:$0xff]
  %v271 = vld [vmem:[%s1 + $0x270] sm:$0xff]
  %v272 = vld [vmem:[%s1 + $0x278] sm:$0xff]
  %v273 = vlaneseq
  %v274 = vshrl.u32 %v273, 7
  %v275 = vsub.s32 0, %v274
  %v276 = vrot.slane %v190, %v275
  %277 = vmatprep.subr.mxu0 0.0
  %278 = vmatpush1.msra.mxu0 %v208
  %279 = vmatprep.subr.mxu0 0.0
  %280 = vmatpush1.msra.mxu0 %v207
  %281 = vmatprep.subr.mxu0 0.0
  %282 = vmatpush1.msra.mxu0 %v206
  %283 = vmatprep.subr.mxu0 0.0
  %284 = vmatpush1.msra.mxu0 %v205
  %285 = vmatprep.subr.mxu0 0.0
  %286 = vmatpush1.msra.mxu0 %v204
  %287 = vmatprep.subr.mxu0 0.0
  %288 = vmatpush1.msra.mxu0 %v203
  %289 = vmatprep.subr.mxu0 0.0
  %290 = vmatpush1.msra.mxu0 %v202
  %291 = vmatprep.subr.mxu0 0.0
  %292 = vmatpush1.msra.mxu0 %v201
  %293 = vmatprep.subr.mxu0 0.0
  %294 = vmatpush1.msra.mxu0 %v200
  %295 = vmatprep.subr.mxu0 0.0
  %296 = vmatpush1.msra.mxu0 %v199
  %297 = vmatprep.subr.mxu0 0.0
  %298 = vmatpush1.msra.mxu0 %v198
  %299 = vmatprep.subr.mxu0 0.0
  %300 = vmatpush1.msra.mxu0 %v197
  %301 = vmatprep.subr.mxu0 0.0
  %302 = vmatpush1.msra.mxu0 %v196
  %303 = vmatprep.subr.mxu0 0.0
  %304 = vmatpush1.msra.mxu0 %v195
  %305 = vmatprep.subr.mxu0 0.0
  %306 = vmatpush1.msra.mxu0 %v194
  %307 = vmatprep.subr.mxu0 0.0
  %308 = vmatpush1.msra.mxu0 %v193
  %309 = vmatprep.subr.mxu0 0.0
  %310 = vmatpush2.msra.mxu0 %v224
  %311 = vmatprep.subr.mxu0 0.0
  %312 = vmatpush2.msra.mxu0 %v223
  %313 = vmatprep.subr.mxu0 0.0
  %314 = vmatpush2.msra.mxu0 %v222
  %315 = vmatprep.subr.mxu0 0.0
  %316 = vmatpush2.msra.mxu0 %v221
  %317 = vmatprep.subr.mxu0 0.0
  %318 = vmatpush2.msra.mxu0 %v220
  %319 = vmatprep.subr.mxu0 0.0
  %320 = vmatpush2.msra.mxu0 %v219
  %321 = vmatprep.subr.mxu0 0.0
  %322 = vmatpush2.msra.mxu0 %v218
  %323 = vmatprep.subr.mxu0 0.0
  %324 = vmatpush2.msra.mxu0 %v217
  %325 = vmatprep.subr.mxu0 0.0
  %326 = vmatpush2.msra.mxu0 %v216
  %327 = vmatprep.subr.mxu0 0.0
  %328 = vmatpush2.msra.mxu0 %v215
  %329 = vmatprep.subr.mxu0 0.0
  %330 = vmatpush2.msra.mxu0 %v214
  %331 = vmatprep.subr.mxu0 0.0
  %332 = vmatpush2.msra.mxu0 %v213
  %333 = vmatprep.subr.mxu0 0.0
  %334 = vmatpush2.msra.mxu0 %v212
  %335 = vmatprep.subr.mxu0 0.0
  %336 = vmatpush2.msra.mxu0 %v211
  %337 = vmatprep.subr.mxu0 0.0
  %338 = vmatpush2.msra.mxu0 %v210
  %339 = vmatprep.subr.mxu0 0.0
  %340 = vmatpush2.msra.mxu0 %v209
  %341 = vmatprep.mubr.f32.mxu0 %v128
  %342 = vmatmul.mubr.f32.gmra.mxu0 %v99
  %v343 = vpop.f32.mrf.mxu0
  %v344 = vadd.f32 %v276, %v343
  %v345 = vpop.f32.mrf.mxu0
  %346 = vmatprep.mubr.f32.mxu0 %v129
  %347 = vmatmul.mubr.f32.gmra.mxu0 %v100
  %v348 = vpop.f32.mrf.mxu0
  %v349 = vadd.f32 %v276, %v348
  %v350 = vpop.f32.mrf.mxu0
  %351 = vmatprep.mubr.f32.mxu0 %v130
  %352 = vmatmul.mubr.f32.gmra.mxu0 %v101
  %v353 = vpop.f32.mrf.mxu0
  %v354 = vadd.f32 %v276, %v353
  %v355 = vpop.f32.mrf.mxu0
  %356 = vmatprep.mubr.f32.mxu0 %v131
  %357 = vmatmul.mubr.f32.gmra.mxu0 %v102
  %v358 = vpop.f32.mrf.mxu0
  %v359 = vadd.f32 %v276, %v358
  %v360 = vpop.f32.mrf.mxu0
  %361 = vdwg.mxu0
  %362 = vmatprep.subr.mxu0 0.0
  %363 = vmatpush1.msra.mxu0 %v240
  %364 = vmatprep.subr.mxu0 0.0
  %365 = vmatpush1.msra.mxu0 %v239
  %366 = vmatprep.subr.mxu0 0.0
  %367 = vmatpush1.msra.mxu0 %v238
  %368 = vmatprep.subr.mxu0 0.0
  %369 = vmatpush1.msra.mxu0 %v237
  %370 = vmatprep.subr.mxu0 0.0
  %371 = vmatpush1.msra.mxu0 %v236
  %372 = vmatprep.subr.mxu0 0.0
  %373 = vmatpush1.msra.mxu0 %v235
  %374 = vmatprep.subr.mxu0 0.0
  %375 = vmatpush1.msra.mxu0 %v234
  %376 = vmatprep.subr.mxu0 0.0
  %377 = vmatpush1.msra.mxu0 %v233
  %378 = vmatprep.subr.mxu0 0.0
  %379 = vmatpush1.msra.mxu0 %v232
  %380 = vmatprep.subr.mxu0 0.0
  %381 = vmatpush1.msra.mxu0 %v231
  %382 = vmatprep.subr.mxu0 0.0
  %383 = vmatpush1.msra.mxu0 %v230
  %384 = vmatprep.subr.mxu0 0.0
  %385 = vmatpush1.msra.mxu0 %v229
  %386 = vmatprep.subr.mxu0 0.0
  %387 = vmatpush1.msra.mxu0 %v228
  %388 = vmatprep.subr.mxu0 0.0
  %389 = vmatpush1.msra.mxu0 %v227
  %390 = vmatprep.subr.mxu0 0.0
  %391 = vmatpush1.msra.mxu0 %v226
  %392 = vmatprep.subr.mxu0 0.0
  %393 = vmatpush1.msra.mxu0 %v225
  %394 = vmatprep.subr.mxu0 0.0
  %395 = vmatpush2.msra.mxu0 %v256
  %396 = vmatprep.subr.mxu0 0.0
  %397 = vmatpush2.msra.mxu0 %v255
  %398 = vmatprep.subr.mxu0 0.0
  %399 = vmatpush2.msra.mxu0 %v254
  %400 = vmatprep.subr.mxu0 0.0
  %401 = vmatpush2.msra.mxu0 %v253
  %402 = vmatprep.subr.mxu0 0.0
  %403 = vmatpush2.msra.mxu0 %v252
  %404 = vmatprep.subr.mxu0 0.0
  %405 = vmatpush2.msra.mxu0 %v251
  %406 = vmatprep.subr.mxu0 0.0
  %407 = vmatpush2.msra.mxu0 %v250
  %408 = vmatprep.subr.mxu0 0.0
  %409 = vmatpush2.msra.mxu0 %v249
  %410 = vmatprep.subr.mxu0 0.0
  %411 = vmatpush2.msra.mxu0 %v248
  %412 = vmatprep.subr.mxu0 0.0
  %413 = vmatpush2.msra.mxu0 %v247
  %414 = vmatprep.subr.mxu0 0.0
  %415 = vmatpush2.msra.mxu0 %v246
  %416 = vmatprep.subr.mxu0 0.0
  %417 = vmatpush2.msra.mxu0 %v245
  %418 = vmatprep.subr.mxu0 0.0
  %419 = vmatpush2.msra.mxu0 %v244
  %420 = vmatprep.subr.mxu0 0.0
  %421 = vmatpush2.msra.mxu0 %v243
  %422 = vmatprep.subr.mxu0 0.0
  %423 = vmatpush2.msra.mxu0 %v242
  %424 = vmatprep.subr.mxu0 0.0
  %425 = vmatpush2.msra.mxu0 %v241
  %426 = vmatprep.mubr.f32.mxu0 %v157
  %427 = vmatmul.mubr.f32.gmra.mxu0 %v17
  %v428 = vpop.f32.mrf.mxu0
  %v429 = vadd.f32 %v344, %v428
  %v430 = vpop.f32.mrf.mxu0
  %431 = vmatprep.mubr.f32.mxu0 %v158
  %432 = vmatmul.mubr.f32.gmra.mxu0 %v18
  %v433 = vpop.f32.mrf.mxu0
  %v434 = vadd.f32 %v349, %v433
  %v435 = vpop.f32.mrf.mxu0
  %436 = vmatprep.mubr.f32.mxu0 %v159
  %437 = vmatmul.mubr.f32.gmra.mxu0 %v19
  %v438 = vpop.f32.mrf.mxu0
  %v439 = vadd.f32 %v354, %v438
  %v440 = vpop.f32.mrf.mxu0
  %441 = vmatprep.mubr.f32.mxu0 %v160
  %442 = vmatmul.mubr.f32.gmra.mxu0 %v20
  %v443 = vpop.f32.mrf.mxu0
  %v444 = vadd.f32 %v359, %v443
  %v445 = vpop.f32.mrf.mxu0
  %446 = vdwg.mxu0
  %447 = vmatprep.subr.mxu0 0.0
  %448 = vmatpush1.msra.mxu0 %v272
  %449 = vmatprep.subr.mxu0 0.0
  %450 = vmatpush1.msra.mxu0 %v271
  %451 = vmatprep.subr.mxu0 0.0
  %452 = vmatpush1.msra.mxu0 %v270
  %453 = vmatprep.subr.mxu0 0.0
  %454 = vmatpush1.msra.mxu0 %v269
  %455 = vmatprep.subr.mxu0 0.0
  %456 = vmatpush1.msra.mxu0 %v268
  %457 = vmatprep.subr.mxu0 0.0
  %458 = vmatpush1.msra.mxu0 %v267
  %459 = vmatprep.subr.mxu0 0.0
  %460 = vmatpush1.msra.mxu0 %v266
  %461 = vmatprep.subr.mxu0 0.0
  %462 = vmatpush1.msra.mxu0 %v265
  %463 = vmatprep.subr.mxu0 0.0
  %464 = vmatpush1.msra.mxu0 %v264
  %465 = vmatprep.subr.mxu0 0.0
  %466 = vmatpush1.msra.mxu0 %v263
  %467 = vmatprep.subr.mxu0 0.0
  %468 = vmatpush1.msra.mxu0 %v262
  %469 = vmatprep.subr.mxu0 0.0
  %470 = vmatpush1.msra.mxu0 %v261
  %471 = vmatprep.subr.mxu0 0.0
  %472 = vmatpush1.msra.mxu0 %v260
  %473 = vmatprep.subr.mxu0 0.0
  %474 = vmatpush1.msra.mxu0 %v259
  %475 = vmatprep.subr.mxu0 0.0
  %476 = vmatpush1.msra.mxu0 %v258
  %477 = vmatprep.subr.mxu0 0.0
  %478 = vmatpush1.msra.mxu0 %v257
  %479 = vmatprep.subr.mxu0 0.0
  %480 = vmatpush2.msra.mxu0 0.0
  %481 = vmatprep.subr.mxu0 0.0
  %482 = vmatpush2.msra.mxu0 0.0
  %483 = vmatprep.subr.mxu0 0.0
  %484 = vmatpush2.msra.mxu0 0.0
  %485 = vmatprep.subr.mxu0 0.0
  %486 = vmatpush2.msra.mxu0 0.0
  %487 = vmatprep.subr.mxu0 0.0
  %488 = vmatpush2.msra.mxu0 0.0
  %489 = vmatprep.subr.mxu0 0.0
  %490 = vmatpush2.msra.mxu0 0.0
  %491 = vmatprep.subr.mxu0 0.0
  %492 = vmatpush2.msra.mxu0 0.0
  %493 = vmatprep.subr.mxu0 0.0
  %494 = vmatpush2.msra.mxu0 0.0
  %495 = vmatprep.subr.mxu0 0.0
  %496 = vmatpush2.msra.mxu0 0.0
  %497 = vmatprep.subr.mxu0 0.0
  %498 = vmatpush2.msra.mxu0 0.0
  %499 = vmatprep.subr.mxu0 0.0
  %500 = vmatpush2.msra.mxu0 0.0
  %501 = vmatprep.subr.mxu0 0.0
  %502 = vmatpush2.msra.mxu0 0.0
  %503 = vmatprep.subr.mxu0 0.0
  %504 = vmatpush2.msra.mxu0 0.0
  %505 = vmatprep.subr.mxu0 0.0
  %506 = vmatpush2.msra.mxu0 0.0
  %507 = vmatprep.subr.mxu0 0.0
  %508 = vmatpush2.msra.mxu0 0.0
  %509 = vmatprep.subr.mxu0 0.0
  %510 = vmatpush2.msra.mxu0 0.0
  %511 = vmatprep.mubr.f32.mxu0 0.0
  %512 = vmatmul.mubr.f32.gmra.mxu0 %v186
  %v513 = vpop.f32.mrf.mxu0
  %v514 = vadd.f32 %v429, %v513
  %v515 = vpop.f32.mrf.mxu0
  %516 = vmatprep.mubr.f32.mxu0 0.0
  %517 = vmatmul.mubr.f32.gmra.mxu0 %v187
  %v518 = vpop.f32.mrf.mxu0
  %v519 = vadd.f32 %v434, %v518
  %v520 = vpop.f32.mrf.mxu0
  %521 = vmatprep.mubr.f32.mxu0 0.0
  %522 = vmatmul.mubr.f32.gmra.mxu0 %v188
  %v523 = vpop.f32.mrf.mxu0
  %v524 = vadd.f32 %v439, %v523
  %v525 = vpop.f32.mrf.mxu0
  %526 = vmatprep.mubr.f32.mxu0 0.0
  %527 = vmatmul.mubr.f32.gmra.mxu0 %v189
  %v528 = vpop.f32.mrf.mxu0
  %v529 = vadd.f32 %v444, %v528
  %v530 = vpop.f32.mrf.mxu0
  %531 = vdwg.mxu0
  %v532 = vmul.f32 %v514, %v514
  %v533 = vmul.f32 %v519, %v519
  %v534 = vmul.f32 %v524, %v524
  %v535 = vmul.f32 %v529, %v529
  %v536 = vld [vmem:[%s2] sm:$0xff]
  %v537 = vld [vmem:[%s2 + $0x8] sm:$0xff]
  %v538 = vld [vmem:[%s2 + $0x10] sm:$0xff]
  %v539 = vld [vmem:[%s2 + $0x18] sm:$0xff]
  %v540 = vld [vmem:[%s2 + $0x20] sm:$0xff]
  %v541 = vld [vmem:[%s2 + $0x28] sm:$0xff]
  %v542 = vld [vmem:[%s2 + $0x30] sm:$0xff]
  %v543 = vld [vmem:[%s2 + $0x38] sm:$0xff]
  %v544 = vld [vmem:[%s2 + $0x40] sm:$0xff]
  %v545 = vld [vmem:[%s2 + $0x48] sm:$0xff]
  %v546 = vld [vmem:[%s2 + $0x50] sm:$0xff]
  %v547 = vld [vmem:[%s2 + $0x58] sm:$0xff]
  %v548 = vld [vmem:[%s2 + $0x60] sm:$0xff]
  %v549 = vld [vmem:[%s2 + $0x68] sm:$0xff]
  %v550 = vld [vmem:[%s2 + $0x70] sm:$0xff]
  %v551 = vld [vmem:[%s2 + $0x78] sm:$0xff]
  %552 = vmatprep.subr.mxu0 0.0
  %553 = vmatpush1.msra.mxu0 %v551
  %554 = vmatprep.subr.mxu0 0.0
  %555 = vmatpush1.msra.mxu0 %v550
  %556 = vmatprep.subr.mxu0 0.0
  %557 = vmatpush1.msra.mxu0 %v549
  %558 = vmatprep.subr.mxu0 0.0
  %559 = vmatpush1.msra.mxu0 %v548
  %560 = vmatprep.subr.mxu0 0.0
  %561 = vmatpush1.msra.mxu0 %v547
  %562 = vmatprep.subr.mxu0 0.0
  %563 = vmatpush1.msra.mxu0 %v546
  %564 = vmatprep.subr.mxu0 0.0
  %565 = vmatpush1.msra.mxu0 %v545
  %566 = vmatprep.subr.mxu0 0.0
  %567 = vmatpush1.msra.mxu0 %v544
  %568 = vmatprep.subr.mxu0 0.0
  %569 = vmatpush1.msra.mxu0 %v543
  %570 = vmatprep.subr.mxu0 0.0
  %571 = vmatpush1.msra.mxu0 %v542
  %572 = vmatprep.subr.mxu0 0.0
  %573 = vmatpush1.msra.mxu0 %v541
  %574 = vmatprep.subr.mxu0 0.0
  %575 = vmatpush1.msra.mxu0 %v540
  %576 = vmatprep.subr.mxu0 0.0
  %577 = vmatpush1.msra.mxu0 %v539
  %578 = vmatprep.subr.mxu0 0.0
  %579 = vmatpush1.msra.mxu0 %v538
  %580 = vmatprep.subr.mxu0 0.0
  %581 = vmatpush1.msra.mxu0 %v537
  %582 = vmatprep.subr.mxu0 0.0
  %583 = vmatpush1.msra.mxu0 %v536
  %584 = vmatprep.subr.mxu0 0.0
  %585 = vmatpush2.msra.mxu0 0.0
  %586 = vmatprep.subr.mxu0 0.0
  %587 = vmatpush2.msra.mxu0 0.0
  %588 = vmatprep.subr.mxu0 0.0
  %589 = vmatpush2.msra.mxu0 0.0
  %590 = vmatprep.subr.mxu0 0.0
  %591 = vmatpush2.msra.mxu0 0.0
  %592 = vmatprep.subr.mxu0 0.0
  %593 = vmatpush2.msra.mxu0 0.0
  %594 = vmatprep.subr.mxu0 0.0
  %595 = vmatpush2.msra.mxu0 0.0
  %596 = vmatprep.subr.mxu0 0.0
  %597 = vmatpush2.msra.mxu0 0.0
  %598 = vmatprep.subr.mxu0 0.0
  %599 = vmatpush2.msra.mxu0 0.0
  %600 = vmatprep.subr.mxu0 0.0
  %601 = vmatpush2.msra.mxu0 0.0
  %602 = vmatprep.subr.mxu0 0.0
  %603 = vmatpush2.msra.mxu0 0.0
  %604 = vmatprep.subr.mxu0 0.0
  %605 = vmatpush2.msra.mxu0 0.0
  %606 = vmatprep.subr.mxu0 0.0
  %607 = vmatpush2.msra.mxu0 0.0
  %608 = vmatprep.subr.mxu0 0.0
  %609 = vmatpush2.msra.mxu0 0.0
  %610 = vmatprep.subr.mxu0 0.0
  %611 = vmatpush2.msra.mxu0 0.0
  %612 = vmatprep.subr.mxu0 0.0
  %613 = vmatpush2.msra.mxu0 0.0
  %614 = vmatprep.subr.mxu0 0.0
  %615 = vmatpush2.msra.mxu0 0.0
  %616 = vmatprep.mubr.f32.mxu0 0.0
  %617 = vmatmul.mubr.f32.gmra.mxu0 %v514
  %v618 = vpop.f32.mrf.mxu0
  %v619 = vadd.f32 0.0, %v618
  %v620 = vpop.f32.mrf.mxu0
  %621 = vmatprep.mubr.f32.mxu0 0.0
  %622 = vmatmul.mubr.f32.gmra.mxu0 %v519
  %v623 = vpop.f32.mrf.mxu0
  %v624 = vadd.f32 0.0, %v623
  %v625 = vpop.f32.mrf.mxu0
  %626 = vmatprep.mubr.f32.mxu0 0.0
  %627 = vmatmul.mubr.f32.gmra.mxu0 %v524
  %v628 = vpop.f32.mrf.mxu0
  %v629 = vadd.f32 0.0, %v628
  %v630 = vpop.f32.mrf.mxu0
  %631 = vmatprep.mubr.f32.mxu0 0.0
  %632 = vmatmul.mubr.f32.gmra.mxu0 %v529
  %v633 = vpop.f32.mrf.mxu0
  %v634 = vadd.f32 0.0, %v633
  %v635 = vpop.f32.mrf.mxu0
  %636 = vmatprep.mubr.f32.mxu0 0.0
  %637 = vmatmul.mubr.f32.gmra.mxu0 %v532
  %v638 = vpop.f32.mrf.mxu0
  %v639 = vadd.f32 0.0, %v638
  %v640 = vpop.f32.mrf.mxu0
  %641 = vmatprep.mubr.f32.mxu0 0.0
  %642 = vmatmul.mubr.f32.gmra.mxu0 %v533
  %v643 = vpop.f32.mrf.mxu0
  %v644 = vadd.f32 0.0, %v643
  %v645 = vpop.f32.mrf.mxu0
  %646 = vmatprep.mubr.f32.mxu0 0.0
  %647 = vmatmul.mubr.f32.gmra.mxu0 %v534
  %v648 = vpop.f32.mrf.mxu0
  %v649 = vadd.f32 0.0, %v648
  %v650 = vpop.f32.mrf.mxu0
  %651 = vmatprep.mubr.f32.mxu0 0.0
  %652 = vmatmul.mubr.f32.gmra.mxu0 %v535
  %v653 = vpop.f32.mrf.mxu0
  %v654 = vadd.f32 0.0, %v653
  %v655 = vpop.f32.mrf.mxu0
  %656 = vdwg.mxu0
  %v657 = vmul.f32 %v619, %v619
  %v658 = vmul.f32 %v624, %v624
  %v659 = vmul.f32 %v629, %v629
  %v660 = vmul.f32 %v634, %v634
  %v661 = vsub.f32 %v639, %v657
  %v662 = vsub.f32 %v644, %v658
  %v663 = vsub.f32 %v649, %v659
  %v664 = vsub.f32 %v654, %v660
  %v665 = vsub.f32 %v514, %v619
  %v666 = vsub.f32 %v519, %v624
  %v667 = vsub.f32 %v524, %v629
  %v668 = vsub.f32 %v529, %v634
  %v669 = vadd.f32 %v661, 1e-05
  %v670 = vadd.f32 %v662, 1e-05
  %v671 = vadd.f32 %v663, 1e-05
  %v672 = vadd.f32 %v664, 1e-05
  %v673 = vrsqrt.pop %v669
  %v674 = vrsqrt.pop %v670
  %v675 = vrsqrt.pop %v671
  %v676 = vrsqrt.pop %v672
  %v677 = vmul.f32 %v665, %v673
  %v678 = vmul.f32 %v666, %v674
  %v679 = vmul.f32 %v667, %v675
  %v680 = vmul.f32 %v668, %v676
  %v681 = vlaneseq
  %v682 = vshrl.u32 %v681, 7
  %v683 = vsub.s32 0, %v682
  %v684 = vrot.slane %v191, %v683
  %v685 = vmul.f32 %v677, %v684
  %v686 = vmul.f32 %v678, %v684
  %v687 = vmul.f32 %v679, %v684
  %v688 = vmul.f32 %v680, %v684
  %v689 = vlaneseq
  %v690 = vshrl.u32 %v689, 7
  %v691 = vsub.s32 0, %v690
  %v692 = vrot.slane %v192, %v691
  %v693 = vadd.f32 %v685, %v692
  %v694 = vadd.f32 %v686, %v692
  %v695 = vadd.f32 %v687, %v692
  %v696 = vadd.f32 %v688, %v692
  %v697 = vmul.f32 %v693, 0.5
  %v698 = vmul.f32 %v694, 0.5
  %v699 = vmul.f32 %v695, 0.5
  %v700 = vmul.f32 %v696, 0.5
  %v701 = vmul.f32 %v693, 0.70710677
  %v702 = vmul.f32 %v694, 0.70710677
  %v703 = vmul.f32 %v695, 0.70710677
  %v704 = vmul.f32 %v696, 0.70710677
  %v705 = verf.f32.pop %v701
  %v706 = verf.f32.pop %v702
  %v707 = verf.f32.pop %v703
  %v708 = verf.f32.pop %v704
  %v709 = vadd.f32 %v705, 1.0
  %v710 = vadd.f32 %v706, 1.0
  %v711 = vadd.f32 %v707, 1.0
  %v712 = vadd.f32 %v708, 1.0
  %v713 = vmul.f32 %v697, %v709
  %v714 = vmul.f32 %v698, %v710
  %v715 = vmul.f32 %v699, %v711
  %v716 = vmul.f32 %v700, %v712
  %717 = vst [vmem:[%s4] sm:$0xff] %v713
  %718 = vst [vmem:[%s4 + $0x8] sm:$0xff] %v714
  %719 = vst [vmem:[%s4 + $0x10] sm:$0xff] %v715
  %720 = vst [vmem:[%s4 + $0x18] sm:$0xff] %v716
  // Predicated region
  $region18: #{conv_layer.1} parent=0 // pred_check
    _
  $region19: #{conv_layer.1} parent=0 // pred_check_branch
    %722 = sbr.rel (0) target = $region21
  $region20: #{conv_layer.1} parent=0 // pred_region
    _
  $region21: #{conv_layer.1} parent=0 // pred_fallthru
    _
  // Predicated region
  $region22: #{conv_layer.1} parent=0 // pred_check
    _
  $region23: #{conv_layer.1} parent=0 // pred_check_branch
    %724 = sbr.rel (0) target = $region25
  $region24: #{conv_layer.1} parent=0 // pred_region
    _
  $region25: #{conv_layer.1} parent=0 // pred_fallthru
    _

</llo_original>
